<compile_context>
chip_gen: v5e
topology: v5e:2x2
jax: 0.10.0
libtpu: 0.0.40
codegen_flags: <defaults>
</compile_context>

<pallas_src>
import functools

import jax
import jax.numpy as jnp
from jax import lax
from jax.experimental import pallas as pl
from jax.experimental.pallas import tpu as pltpu

LANES = 128
SUBLANES = 8
# (2048, 128) f32 = 1 MiB per input per grid step; 3 inputs x 2 pipeline
# buffers = 6 MiB, comfortably under v5e's 16 MiB default scoped-VMEM limit
# (and far under v6e/v7x limits).  Half of that for bf16/fp16 inputs.
TARGET_BLOCK_ROWS = 2048


def _reg_l1_kp_kernel(o_ref, t_ref, m_ref, sum_ref, cnt_ref, *,
                      block_rows, total_rows, need_mask):
    """One grid step: fold a (block_rows, 128) tile into (8, 128) partials."""
    # Cast to f32 inside the kernel so HBM traffic stays in the native dtype.
    o = o_ref[...].astype(jnp.float32)
    t = t_ref[...].astype(jnp.float32)
    m = m_ref[...].astype(jnp.float32)

    diff = jnp.abs((o - t) * m)                # == |o*m - t*m|
    cnt = (m != 0.0).astype(jnp.float32)       # mask.bool().float()

    if need_mask:
        # Ragged last block: rows >= total_rows hold undefined data.
        row = pl.program_id(0) * block_rows + lax.broadcasted_iota(
            jnp.int32, (block_rows, LANES), 0)
        valid = row < total_rows
        diff = jnp.where(valid, diff, 0.0)
        cnt = jnp.where(valid, cnt, 0.0)

    # VPU-only fold into a vreg-shaped (8, 128) partial; the expensive
    # cross-lane/sublane reduction happens exactly once, outside the kernel.
    sum_ref[...] = jnp.sum(diff.reshape(-1, SUBLANES, LANES), axis=0)
    cnt_ref[...] = jnp.sum(cnt.reshape(-1, SUBLANES, LANES), axis=0)


def reg_l1_kp_loss(output, target, mask):
    """Pallas implementation of RegL1KpLoss.forward. Returns a scalar f32."""
    assert output.shape == target.shape == mask.shape
    n = output.size

    # Flatten in the native dtype (free for contiguous arrays — no full pad,
    # no upcast pass over HBM).
    o = output.reshape(-1)
    t = target.reshape(-1)
    m = mask.reshape(-1)

    # Lane-align only when needed (the zero padding contributes nothing to
    # either reduction).
    rows = pl.cdiv(n, LANES)
    if n != rows * LANES:
        pad = rows * LANES - n
        o = jnp.pad(o, (0, pad))
        t = jnp.pad(t, (0, pad))
        m = jnp.pad(m, (0, pad))

    o2 = o.reshape(rows, LANES)
    t2 = t.reshape(rows, LANES)
    m2 = m.reshape(rows, LANES)

    # Sublane-align tiny inputs (only touches arrays with < 8*128 elements).
    if rows < SUBLANES:
        pad_rows = SUBLANES - rows
        o2 = jnp.pad(o2, ((0, pad_rows), (0, 0)))
        t2 = jnp.pad(t2, ((0, pad_rows), (0, 0)))
        m2 = jnp.pad(m2, ((0, pad_rows), (0, 0)))
        rows = SUBLANES

    block_rows = min(TARGET_BLOCK_ROWS, (rows // SUBLANES) * SUBLANES)
    num_blocks = pl.cdiv(rows, block_rows)
    need_mask = num_blocks * block_rows != rows

    kernel = functools.partial(
        _reg_l1_kp_kernel,
        block_rows=block_rows, total_rows=rows, need_mask=need_mask)

    in_spec = pl.BlockSpec((block_rows, LANES), lambda i: (i, 0))
    out_spec = pl.BlockSpec((SUBLANES, LANES), lambda i: (i, 0))

    partial_sum, partial_cnt = pl.pallas_call(
        kernel,
        out_shape=(
            jax.ShapeDtypeStruct((num_blocks * SUBLANES, LANES), jnp.float32),
            jax.ShapeDtypeStruct((num_blocks * SUBLANES, LANES), jnp.float32),
        ),
        grid_spec=pltpu.PrefetchScalarGridSpec(
            num_scalar_prefetch=0,
            grid=(num_blocks,),
            in_specs=[in_spec, in_spec, in_spec],
            out_specs=[out_spec, out_spec],
        ),
        # Fully parallel grid: each step writes its own partial block, so on
        # v7x both TensorCores share the work; no-op cost on v5e/v6e.
        compiler_params=pltpu.CompilerParams(
            dimension_semantics=("parallel",),
        ),
    )(o2, t2, m2)

    total = jnp.sum(partial_sum)
    count = jnp.sum(partial_cnt)
    return total / (count + 0.0001)


def reg_l1_kp_loss_ref(output, target, mask):
    """Pure-JAX reference mirroring the PyTorch module."""
    o = output.astype(jnp.float32)
    t = target.astype(jnp.float32)
    m = mask.astype(jnp.float32)
    loss = jnp.sum(jnp.abs(o * m - t * m))
    cnt = jnp.sum((m != 0.0).astype(jnp.float32))
    return loss / (cnt + 0.0001)


if __name__ == "__main__":
    key = jax.random.PRNGKey(0)
    k1, k2, k3 = jax.random.split(key, 3)

    # NCHW, small shapes
    B, C, H, W = 2, 4, 16, 16
    output = jax.random.normal(k1, (B, C, H, W), dtype=jnp.float32)
    target = jax.random.normal(k2, (B, C, H, W), dtype=jnp.float32)
    # mask: mix of zeros and positive values (like keypoint weight maps)
    mask = (jax.random.uniform(k3, (B, C, H, W)) > 0.5).astype(jnp.float32)

    loss = jax.block_until_ready(reg_l1_kp_loss(output, target, mask))
    ref = reg_l1_kp_loss_ref(output, target, mask)
    assert jnp.allclose(loss, ref, rtol=1e-5, atol=1e-5), (loss, ref)

    # bf16 inputs: kernel streams bf16 from HBM, computes in f32.
    loss_bf16 = jax.block_until_ready(
        reg_l1_kp_loss(output.astype(jnp.bfloat16),
                       target.astype(jnp.bfloat16),
                       mask.astype(jnp.bfloat16)))
    ref_bf16 = reg_l1_kp_loss_ref(output.astype(jnp.bfloat16),
                                  target.astype(jnp.bfloat16),
                                  mask.astype(jnp.bfloat16))
    assert jnp.allclose(loss_bf16, ref_bf16, rtol=1e-4, atol=1e-4), (
        loss_bf16, ref_bf16)

    # Ragged / non-lane-aligned shape exercises the in-kernel tail masking.
    k4, k5, k6 = jax.random.split(k3, 3)
    shp = (3, 5, 7, 11)
    o_r = jax.random.normal(k4, shp, dtype=jnp.float32)
    t_r = jax.random.normal(k5, shp, dtype=jnp.float32)
    m_r = (jax.random.uniform(k6, shp) > 0.5).astype(jnp.float32)
    loss_r = jax.block_until_ready(reg_l1_kp_loss(o_r, t_r, m_r))
    ref_r = reg_l1_kp_loss_ref(o_r, t_r, m_r)
    assert jnp.allclose(loss_r, ref_r, rtol=1e-5, atol=1e-5), (loss_r, ref_r)

    print("KERNEL_OK")
</pallas_src>

<mosaic_0001>
module attributes {stable_mosaic.version = 11 : i64} {
  func.func @_reg_l1_kp_kernel(%arg0: i32, %arg1: memref<16x128xf32, #tpu.memory_space<vmem>>, %arg2: memref<16x128xf32, #tpu.memory_space<vmem>>, %arg3: memref<16x128xf32, #tpu.memory_space<vmem>>, %arg4: memref<8x128xf32, #tpu.memory_space<vmem>>, %arg5: memref<8x128xf32, #tpu.memory_space<vmem>>) attributes {dimension_semantics = [#tpu.dimension_semantics<parallel>], iteration_bounds = array<i64: 1>, scalar_prefetch = 0 : i64, scratch_operands = 0 : i64, tpu.core_type = #tpu.core_type<tc>, window_params = [{transform_indices = @transform_0, window_bounds = array<i64: 16, 128>}, {transform_indices = @transform_1, window_bounds = array<i64: 16, 128>}, {transform_indices = @transform_2, window_bounds = array<i64: 16, 128>}, {transform_indices = @transform_3, window_bounds = array<i64: 8, 128>}, {transform_indices = @transform_4, window_bounds = array<i64: 8, 128>}]} {
    %c0 = arith.constant 0 : index
    %c0_0 = arith.constant 0 : index
    %0 = vector.load %arg1[%c0, %c0_0] : memref<16x128xf32, #tpu.memory_space<vmem>>, vector<16x128xf32>
    %c0_1 = arith.constant 0 : index
    %c0_2 = arith.constant 0 : index
    %1 = vector.load %arg2[%c0_1, %c0_2] : memref<16x128xf32, #tpu.memory_space<vmem>>, vector<16x128xf32>
    %c0_3 = arith.constant 0 : index
    %c0_4 = arith.constant 0 : index
    %2 = vector.load %arg3[%c0_3, %c0_4] : memref<16x128xf32, #tpu.memory_space<vmem>>, vector<16x128xf32>
    %3 = arith.subf %0, %1 : vector<16x128xf32>
    %4 = arith.mulf %3, %2 : vector<16x128xf32>
    %5 = math.absf %4 : vector<16x128xf32>
    %cst = arith.constant 0.000000e+00 : f32
    %6 = vector.broadcast %cst : f32 to vector<16x128xf32>
    %7 = arith.cmpf one, %2, %6 : vector<16x128xf32>
    %8 = arith.extui %7 : vector<16x128xi1> to vector<16x128xi32>
    %9 = arith.sitofp %8 : vector<16x128xi32> to vector<16x128xf32>
    %10 = vector.shape_cast %5 : vector<16x128xf32> to vector<2x8x128xf32>
    %cst_5 = arith.constant dense<0.000000e+00> : vector<8x128xf32>
    %11 = vector.multi_reduction <add>, %10, %cst_5 [0] : vector<2x8x128xf32> to vector<8x128xf32>
    %c0_6 = arith.constant 0 : index
    %c0_7 = arith.constant 0 : index
    %12 = vector.load %arg4[%c0_6, %c0_7] : memref<8x128xf32, #tpu.memory_space<vmem>>, vector<8x128xf32>
    tpu.vector_store %arg4[%c0_6, %c0_7], %11 {strides = array<i32>} : memref<8x128xf32, #tpu.memory_space<vmem>>, vector<8x128xf32>,
    %13 = vector.shape_cast %9 : vector<16x128xf32> to vector<2x8x128xf32>
    %cst_8 = arith.constant dense<0.000000e+00> : vector<8x128xf32>
    %14 = vector.multi_reduction <add>, %13, %cst_8 [0] : vector<2x8x128xf32> to vector<8x128xf32>
    %c0_9 = arith.constant 0 : index
    %c0_10 = arith.constant 0 : index
    %15 = vector.load %arg5[%c0_9, %c0_10] : memref<8x128xf32, #tpu.memory_space<vmem>>, vector<8x128xf32>
    tpu.vector_store %arg5[%c0_9, %c0_10], %14 {strides = array<i32>} : memref<8x128xf32, #tpu.memory_space<vmem>>, vector<8x128xf32>,
    return
  }
  func.func @transform_0(%arg0: i32) -> (i32, i32) {
    %c0_i32 = arith.constant 0 : i32
    %c0_i32_0 = arith.constant 0 : i32
    return %arg0, %c0_i32 : i32, i32
  }
  func.func @transform_1(%arg0: i32) -> (i32, i32) {
    %c0_i32 = arith.constant 0 : i32
    %c0_i32_0 = arith.constant 0 : i32
    return %arg0, %c0_i32 : i32, i32
  }
  func.func @transform_2(%arg0: i32) -> (i32, i32) {
    %c0_i32 = arith.constant 0 : i32
    %c0_i32_0 = arith.constant 0 : i32
    return %arg0, %c0_i32 : i32, i32
  }
  func.func @transform_3(%arg0: i32) -> (i32, i32) {
    %c0_i32 = arith.constant 0 : i32
    %c0_i32_0 = arith.constant 0 : i32
    return %arg0, %c0_i32 : i32, i32
  }
  func.func @transform_4(%arg0: i32) -> (i32, i32) {
    %c0_i32 = arith.constant 0 : i32
    %c0_i32_0 = arith.constant 0 : i32
    return %arg0, %c0_i32 : i32, i32
  }
}

</mosaic_0001>

<llo_original>
// kernel: tpu_custom_call.1
$region0: #{tpu_custom_call.1}
  #allocation0 [shape = 'u32[]', space=smem, size = 0x4, offset = 0x4, fixed_abs, tag = 'smem constant byte address 0x4 - core index']
  #allocation1 [shape = 'u32[72,128]{1,0:T(1,128)}', space=vmem, size = 0x9000, scoped, tag = 'internal scratch']
  %s0 = inlined_call_operand.hbm [shape: f32[16,128], index: 0, kind: input, shape index: {}]
  %s1 = inlined_call_operand.hbm [shape: f32[16,128], index: 1, kind: input, shape index: {}]
  %s2 = inlined_call_operand.hbm [shape: f32[16,128], index: 2, kind: input, shape index: {}]
  %s3 = inlined_call_operand.hbm [shape: f32[8,128], index: 3, kind: output, shape index: {0}]
  %s4 = inlined_call_operand.hbm [shape: f32[8,128], index: 4, kind: output, shape index: {1}]
  %5 = xla_tuple %s3, %s4
  %s6 = sld [smem:[#allocation0]]
  $region42: #{tpu_custom_call.1} parent=0
    _
  %s8 = ssub.s32 1, %s6
  %s9 = scalar_select 0, %s8, %s6
  $region1: #{tpu_custom_call.1} parent=0
    #allocation2 [shape = 'u8[8192]{0}', space=vmem, size = 0x2000, scoped, tag = 'input window, operand 0, single buffered']
    #allocation3 [shape = 's32[1]{0}', space=sflag, size = 0x4, scoped, tag = 'scoped memory for tpu_custom_call.1']
    #allocation4 [shape = 's32[1]{0}', space=sflag, size = 0x4, scoped, tag = 'scoped memory for tpu_custom_call.1']
    #allocation5 [shape = 'u8[8192]{0}', space=vmem, size = 0x2000, scoped, tag = 'input window, operand 1, single buffered']
    #allocation6 [shape = 's32[1]{0}', space=sflag, size = 0x4, scoped, tag = 'scoped memory for tpu_custom_call.1']
    #allocation7 [shape = 'u8[8192]{0}', space=vmem, size = 0x2000, scoped, tag = 'input window, operand 2, single buffered']
    #allocation8 [shape = 'u8[4096]{0}', space=vmem, size = 0x1000, scoped, tag = 'output window, operand 0, single buffered']
    #allocation9 [shape = 'u8[4096]{0}', space=vmem, size = 0x1000, scoped, tag = 'output window, operand 1, single buffered']
    #allocation10 [shape = 's32[1]{0}', space=sflag, size = 0x4, scoped, tag = 'scoped memory for tpu_custom_call.1']
    %10 = vsyncpa [#allocation3], 0
    %11 = vsyncpa [#allocation6], 0
    %12 = vsyncpa [#allocation4], 0
    %13 = vsyncpa [#allocation10], 0
    // Predicated region
    $region2: #{tpu_custom_call.1} parent=1 // pred_check
      _
    $region3: #{tpu_custom_call.1} parent=1 // pred_check_branch
      %15 = sbr.rel (0) target = $region5
    $region4: #{tpu_custom_call.1} parent=1 // pred_region
      %17 = vsyncadd [#allocation3], 0
      %s18 = sshll.u32 %s0, 4
      %s19 = int_to_ptr.hbm [resolvable:$true] %s18
      %s20 = sshll.u32 [#allocation2], 4
      %s21 = int_to_ptr.vmem [resolvable:$true] %s20
      %26 = dma.hbm_to_vmem [thread:$0]  %s19, 256, %s21, [#allocation3], 128, 128, 8
    $region5: #{tpu_custom_call.1} parent=1 // pred_fallthru
      _
    // Predicated region
    $region6: #{tpu_custom_call.1} parent=1 // pred_check
      _
    $region7: #{tpu_custom_call.1} parent=1 // pred_check_branch
      %28 = sbr.rel (0) target = $region9
    $region8: #{tpu_custom_call.1} parent=1 // pred_region
      %30 = vsyncadd [#allocation6], 0
      %s31 = sshll.u32 %s1, 4
      %s32 = int_to_ptr.hbm [resolvable:$true] %s31
      %s33 = sshll.u32 [#allocation5], 4
      %s34 = int_to_ptr.vmem [resolvable:$true] %s33
      %39 = dma.hbm_to_vmem [thread:$0]  %s32, 256, %s34, [#allocation6], 128, 128, 8
    $region9: #{tpu_custom_call.1} parent=1 // pred_fallthru
      _
    // Predicated region
    $region10: #{tpu_custom_call.1} parent=1 // pred_check
      _
    $region11: #{tpu_custom_call.1} parent=1 // pred_check_branch
      %41 = sbr.rel (0) target = $region13
    $region12: #{tpu_custom_call.1} parent=1 // pred_region
      %43 = vsyncadd [#allocation6], 0
      %s44 = sshll.u32 %s2, 4
      %s45 = int_to_ptr.hbm [resolvable:$true] %s44
      %s46 = sshll.u32 [#allocation7], 4
      %s47 = int_to_ptr.vmem [resolvable:$true] %s46
      %52 = dma.hbm_to_vmem [thread:$0]  %s45, 256, %s47, [#allocation6], 128, 128, 8
    $region13: #{tpu_custom_call.1} parent=1 // pred_fallthru
      _
    // Predicated region
    $region14: #{tpu_custom_call.1} parent=1 // pred_check
      _
    $region15: #{tpu_custom_call.1} parent=1 // pred_check_branch
      %54 = sbr.rel (0) target = $region17
    $region16: #{tpu_custom_call.1} parent=1 // pred_region
      %56 = dma.done [#allocation3], 256
    $region17: #{tpu_custom_call.1} parent=1 // pred_fallthru
      _
    // Predicated region
    $region18: #{tpu_custom_call.1} parent=1 // pred_check
      _
    $region19: #{tpu_custom_call.1} parent=1 // pred_check_branch
      %58 = sbr.rel (0) target = $region21
    $region20: #{tpu_custom_call.1} parent=1 // pred_region
      %60 = dma.done [#allocation6], 256
    $region21: #{tpu_custom_call.1} parent=1 // pred_fallthru
      _
    // Predicated region
    $region22: #{tpu_custom_call.1} parent=1 // pred_check
      _
    $region23: #{tpu_custom_call.1} parent=1 // pred_check_branch
      %62 = sbr.rel (0) target = $region25
    $region24: #{tpu_custom_call.1} parent=1 // pred_region
      %64 = dma.done [#allocation6], 256
    $region25: #{tpu_custom_call.1} parent=1 // pred_fallthru
      _
    %v65 = vld [vmem:[#allocation2] sm:$0xff]
    %v66 = vld [vmem:[#allocation2 + $0x8] sm:$0xff]
    %v67 = vld [vmem:[#allocation5] sm:$0xff]
    %v68 = vld [vmem:[#allocation5 + $0x8] sm:$0xff]
    %v69 = vld [vmem:[#allocation7] sm:$0xff]
    %v70 = vld [vmem:[#allocation7 + $0x8] sm:$0xff]
    %v71 = vsub.f32 %v65, %v67
    %v72 = vsub.f32 %v66, %v68
    %v73 = vmul.f32 %v71, %v69
    %v74 = vmul.f32 %v72, %v70
    %v75 = vand.u32 2147483647, %v73
    %v76 = vand.u32 2147483647, %v74
    %vm77 = vcmp.ne.f32.partialorder %v69, 0.0
    %vm78 = vcmp.ne.f32.partialorder %v70, 0.0
    %v79 = vsel %vm77, 1, 0
    %v80 = vsel %vm78, 1, 0
    %v81 = vcvt.s32.f32 %v79
    %v82 = vcvt.s32.f32 %v80
    %v83 = vadd.f32 %v75, %v76
    %84 = vst [vmem:[#allocation8] sm:$0xff] %v83
    %v85 = vadd.f32 %v81, %v82
    %86 = vst [vmem:[#allocation9] sm:$0xff] %v85
    // Predicated region
    $region26: #{tpu_custom_call.1} parent=1 // pred_check
      _
    $region27: #{tpu_custom_call.1} parent=1 // pred_check_branch
      %88 = sbr.rel (0) target = $region29
    $region28: #{tpu_custom_call.1} parent=1 // pred_region
      %90 = vsyncadd [#allocation4], 0
      %s92 = sshll.u32 [#allocation8], 4
      %s93 = int_to_ptr.vmem [resolvable:$true] %s92
      %s94 = sshll.u32 %s3, 4
      %s95 = int_to_ptr.hbm [resolvable:$true] %s94
      %97 = dma.vmem_to_hbm [thread:$0]  %s93, 128, %s95, [#allocation4]
    $region29: #{tpu_custom_call.1} parent=1 // pred_fallthru
      _
    // Predicated region
    $region30: #{tpu_custom_call.1} parent=1 // pred_check
      _
    $region31: #{tpu_custom_call.1} parent=1 // pred_check_branch
      %99 = sbr.rel (0) target = $region33
    $region32: #{tpu_custom_call.1} parent=1 // pred_region
      %101 = vsyncadd [#allocation10], 0
      %s103 = sshll.u32 [#allocation9], 4
      %s104 = int_to_ptr.vmem [resolvable:$true] %s103
      %s105 = sshll.u32 %s4, 4
      %s106 = int_to_ptr.hbm [resolvable:$true] %s105
      %108 = dma.vmem_to_hbm [thread:$0]  %s104, 128, %s106, [#allocation10]
    $region33: #{tpu_custom_call.1} parent=1 // pred_fallthru
      _
    // Predicated region
    $region34: #{tpu_custom_call.1} parent=1 // pred_check
      _
    $region35: #{tpu_custom_call.1} parent=1 // pred_check_branch
      %110 = sbr.rel (0) target = $region37
    $region36: #{tpu_custom_call.1} parent=1 // pred_region
      %112 = dma.done [#allocation4], 128
    $region37: #{tpu_custom_call.1} parent=1 // pred_fallthru
      _
    // Predicated region
    $region38: #{tpu_custom_call.1} parent=1 // pred_check
      _
    $region39: #{tpu_custom_call.1} parent=1 // pred_check_branch
      %114 = sbr.rel (0) target = $region41
    $region40: #{tpu_custom_call.1} parent=1 // pred_region
      %116 = dma.done [#allocation10], 128
    $region41: #{tpu_custom_call.1} parent=1 // pred_fallthru
      _
    %117 = vsyncpa [#allocation3], 1
    %118 = vsyncpa [#allocation6], 1
    %119 = vsyncpa [#allocation4], 1
    %120 = vsyncpa [#allocation10], 1

</llo_original>
